<compile_context>
chip_gen: v7x
topology: tpu7x:2x2x1
jax: 0.10.0
libtpu: 0.0.40
codegen_flags: <defaults>
</compile_context>

<pallas_src>
import functools

import jax
import jax.numpy as jnp
from jax.experimental import pallas as pl
from jax.experimental.pallas import tpu as pltpu


def _round_up(x: int, m: int) -> int:
    return (x + m - 1) // m * m


def _fused_mlp_kernel(x_ref, *refs, num_layers, leaky_slope, use_bf16):
    """Whole MLP in one kernel invocation.

    refs = (w0, b0, w1, b1, ..., w_{L-1}, b_{L-1}, o_ref)
    x_ref: [tile_b, in_p]; w_i: [d_in_p, d_out_p]; b_i: [1, d_out_p]
    """
    o_ref = refs[-1]
    wb_refs = refs[:-1]

    h = x_ref[...]                               # f32 activations, stay in VMEM
    for i in range(num_layers):
        w = wb_refs[2 * i][...]
        b = wb_refs[2 * i + 1][...]              # [1, out_p], broadcast once
        if use_bf16:
            y = jnp.dot(h.astype(jnp.bfloat16), w.astype(jnp.bfloat16),
                        preferred_element_type=jnp.float32)
        else:
            y = jnp.dot(h, w, preferred_element_type=jnp.float32)
        y = y + b                                # bias add in f32
        if i < num_layers - 1:                   # hidden layers: LeakyReLU
            y = jnp.where(y >= 0, y, leaky_slope * y)
        h = y
    o_ref[...] = h.astype(o_ref.dtype)


def generator_forward(x, params, *, leaky_slope=0.2, batch_tile=256,
                      use_bf16=False):
    """Fused forward pass of the Generator MLP as one pallas_call."""
    batch, in_dim = x.shape
    num_layers = len(params)
    assert num_layers >= 1

    # --- zero-pad every feature dim to a 128-lane multiple (exactness kept) ---
    in_p = _round_up(in_dim, 128)
    flat_wb = []
    prev_p, prev_dim = in_p, in_dim
    for (w, b) in params:
        din, dout = w.shape
        assert din == prev_dim
        dout_p = _round_up(dout, 128)
        w_p = jnp.zeros((prev_p, dout_p), jnp.float32).at[:din, :dout].set(w)
        b_p = jnp.zeros((1, dout_p), jnp.float32).at[:, :dout].set(b[None, :])
        flat_wb += [w_p, b_p]
        prev_p, prev_dim = dout_p, dout
    out_dim, out_p = prev_dim, prev_p

    # --- pad / tile the batch axis ---
    tile_b = min(_round_up(batch, 8), batch_tile)
    batch_p = _round_up(batch, tile_b)
    num_tiles = batch_p // tile_b
    x_p = jnp.zeros((batch_p, in_p), jnp.float32).at[:batch, :in_dim].set(x)

    kernel = functools.partial(_fused_mlp_kernel, num_layers=num_layers,
                               leaky_slope=leaky_slope, use_bf16=use_bf16)
    out_shape = jax.ShapeDtypeStruct((batch_p, out_p), jnp.float32)

    if num_tiles == 1:
        # Tiny problem: no grid, whole arrays resident in VMEM.
        vmem_spec = pl.BlockSpec(memory_space=pltpu.MemorySpace.VMEM)
        y_p = pl.pallas_call(
            kernel,
            out_shape=out_shape,
            in_specs=[vmem_spec] * (1 + len(flat_wb)),
            out_specs=vmem_spec,
        )(x_p, *flat_wb)
    else:
        # Batch-tiled grid; weights pinned (same block every step); batch axis
        # marked "parallel" so v7x can shard it across its two TensorCores and
        # the pipeline overlaps tile i+1 DMA with tile i compute.
        in_specs = [pl.BlockSpec((tile_b, in_p), lambda i: (i, 0))]
        for arr in flat_wb:
            in_specs.append(pl.BlockSpec(arr.shape, lambda i: (0, 0)))
        y_p = pl.pallas_call(
            kernel,
            out_shape=out_shape,
            grid=(num_tiles,),
            in_specs=in_specs,
            out_specs=pl.BlockSpec((tile_b, out_p), lambda i: (i, 0)),
            compiler_params=pltpu.CompilerParams(
                dimension_semantics=("parallel",)),
        )(x_p, *flat_wb)

    return y_p[:batch, :out_dim]


def init_generator_params(key, noise_dim, cond_dim, output_dim, num_layers,
                          hidden_dim):
    """Deterministic init mirroring the shapes of the PyTorch Generator.

    Returns list of (W, b) with W: [in, out], b: [out].
    """
    dims = []
    in_dim = noise_dim + cond_dim
    for _ in range(num_layers):
        dims.append((in_dim, hidden_dim))
        in_dim = hidden_dim
    dims.append((in_dim, output_dim))

    params = []
    for (din, dout) in dims:
        key, kw, kb = jax.random.split(key, 3)
        bound = 1.0 / (din ** 0.5)  # PyTorch default Linear init range
        w = jax.random.uniform(kw, (din, dout), jnp.float32, -bound, bound)
        bvec = jax.random.uniform(kb, (dout,), jnp.float32, -bound, bound)
        params.append((w, bvec))
    return params


def generator_forward_ref(x, params, leaky_slope=0.2):
    """Pure-JAX reference for correctness check."""
    h = x
    num_hidden = len(params) - 1
    for i, (w, b) in enumerate(params):
        h = h @ w + b
        if i < num_hidden:
            h = jnp.where(h >= 0, h, leaky_slope * h)
    return h


if __name__ == "__main__":
    noise_dim = 16
    cond_dim = 16
    output_dim = 8
    num_layers = 3
    hidden_dim = 32

    key = jax.random.PRNGKey(0)
    key, kp = jax.random.split(key)
    params = init_generator_params(kp, noise_dim, cond_dim, output_dim,
                                   num_layers, hidden_dim)

    # Small batch: exercises the grid-less, all-in-VMEM fused path.
    key, kx = jax.random.split(key)
    x_small = jax.random.normal(kx, (8, noise_dim + cond_dim), jnp.float32)
    out_small = jax.block_until_ready(generator_forward(x_small, params))
    ref_small = generator_forward_ref(x_small, params)
    assert out_small.shape == (8, output_dim)
    assert jnp.allclose(out_small, ref_small, atol=1e-4, rtol=1e-4)

    # Larger batch: exercises the batch-tiled "parallel" grid path.
    key, kx2 = jax.random.split(key)
    x_big = jax.random.normal(kx2, (1000, noise_dim + cond_dim), jnp.float32)
    out_big = jax.block_until_ready(
        generator_forward(x_big, params, batch_tile=256))
    ref_big = generator_forward_ref(x_big, params)
    assert out_big.shape == (1000, output_dim)
    assert jnp.allclose(out_big, ref_big, atol=1e-4, rtol=1e-4)

    print("KERNEL_OK")
</pallas_src>

<mosaic_0001>
module attributes {stable_mosaic.version = 11 : i64} {
  func.func @_fused_mlp_kernel(%arg0: memref<8x128xf32, #tpu.memory_space<vmem>>, %arg1: memref<128x128xf32, #tpu.memory_space<vmem>>, %arg2: memref<1x128xf32, #tpu.memory_space<vmem>>, %arg3: memref<128x128xf32, #tpu.memory_space<vmem>>, %arg4: memref<1x128xf32, #tpu.memory_space<vmem>>, %arg5: memref<128x128xf32, #tpu.memory_space<vmem>>, %arg6: memref<1x128xf32, #tpu.memory_space<vmem>>, %arg7: memref<128x128xf32, #tpu.memory_space<vmem>>, %arg8: memref<1x128xf32, #tpu.memory_space<vmem>>, %arg9: memref<8x128xf32, #tpu.memory_space<vmem>>) attributes {dimension_semantics = [], scalar_prefetch = 0 : i64, scratch_operands = 0 : i64, tpu.core_type = #tpu.core_type<tc>} {
    %c0 = arith.constant 0 : index
    %c0_0 = arith.constant 0 : index
    %0 = vector.load %arg0[%c0, %c0_0] : memref<8x128xf32, #tpu.memory_space<vmem>>, vector<8x128xf32>
    %c0_1 = arith.constant 0 : index
    %c0_2 = arith.constant 0 : index
    %1 = vector.load %arg1[%c0_1, %c0_2] : memref<128x128xf32, #tpu.memory_space<vmem>>, vector<128x128xf32>
    %c0_3 = arith.constant 0 : index
    %c0_4 = arith.constant 0 : index
    %2 = vector.load %arg2[%c0_3, %c0_4] : memref<1x128xf32, #tpu.memory_space<vmem>>, vector<1x128xf32>
    %cst = arith.constant dense<0.000000e+00> : vector<8x128xf32>
    %3 = tpu.matmul %0, %1, %cst {dimension_numbers = #tpu.dot_dimension_numbers<[1], [0], [0], [1], [0, 0, 1, 1], [], []>} : vector<8x128xf32>, vector<128x128xf32>, vector<8x128xf32> -> vector<8x128xf32>
    %4 = vector.broadcast %2 : vector<1x128xf32> to vector<8x128xf32>
    %5 = arith.addf %3, %4 : vector<8x128xf32>
    %cst_5 = arith.constant 0.000000e+00 : f32
    %6 = vector.broadcast %cst_5 : f32 to vector<8x128xf32>
    %7 = arith.cmpf oge, %5, %6 : vector<8x128xf32>
    %cst_6 = arith.constant 2.000000e-01 : f32
    %8 = vector.broadcast %cst_6 : f32 to vector<8x128xf32>
    %9 = arith.mulf %8, %5 : vector<8x128xf32>
    %10 = arith.select %7, %5, %9 : vector<8x128xi1>, vector<8x128xf32>
    %c0_7 = arith.constant 0 : index
    %c0_8 = arith.constant 0 : index
    %11 = vector.load %arg3[%c0_7, %c0_8] : memref<128x128xf32, #tpu.memory_space<vmem>>, vector<128x128xf32>
    %c0_9 = arith.constant 0 : index
    %c0_10 = arith.constant 0 : index
    %12 = vector.load %arg4[%c0_9, %c0_10] : memref<1x128xf32, #tpu.memory_space<vmem>>, vector<1x128xf32>
    %cst_11 = arith.constant dense<0.000000e+00> : vector<8x128xf32>
    %13 = tpu.matmul %10, %11, %cst_11 {dimension_numbers = #tpu.dot_dimension_numbers<[1], [0], [0], [1], [0, 0, 1, 1], [], []>} : vector<8x128xf32>, vector<128x128xf32>, vector<8x128xf32> -> vector<8x128xf32>
    %14 = vector.broadcast %12 : vector<1x128xf32> to vector<8x128xf32>
    %15 = arith.addf %13, %14 : vector<8x128xf32>
    %cst_12 = arith.constant 0.000000e+00 : f32
    %16 = vector.broadcast %cst_12 : f32 to vector<8x128xf32>
    %17 = arith.cmpf oge, %15, %16 : vector<8x128xf32>
    %cst_13 = arith.constant 2.000000e-01 : f32
    %18 = vector.broadcast %cst_13 : f32 to vector<8x128xf32>
    %19 = arith.mulf %18, %15 : vector<8x128xf32>
    %20 = arith.select %17, %15, %19 : vector<8x128xi1>, vector<8x128xf32>
    %c0_14 = arith.constant 0 : index
    %c0_15 = arith.constant 0 : index
    %21 = vector.load %arg5[%c0_14, %c0_15] : memref<128x128xf32, #tpu.memory_space<vmem>>, vector<128x128xf32>
    %c0_16 = arith.constant 0 : index
    %c0_17 = arith.constant 0 : index
    %22 = vector.load %arg6[%c0_16, %c0_17] : memref<1x128xf32, #tpu.memory_space<vmem>>, vector<1x128xf32>
    %cst_18 = arith.constant dense<0.000000e+00> : vector<8x128xf32>
    %23 = tpu.matmul %20, %21, %cst_18 {dimension_numbers = #tpu.dot_dimension_numbers<[1], [0], [0], [1], [0, 0, 1, 1], [], []>} : vector<8x128xf32>, vector<128x128xf32>, vector<8x128xf32> -> vector<8x128xf32>
    %24 = vector.broadcast %22 : vector<1x128xf32> to vector<8x128xf32>
    %25 = arith.addf %23, %24 : vector<8x128xf32>
    %cst_19 = arith.constant 0.000000e+00 : f32
    %26 = vector.broadcast %cst_19 : f32 to vector<8x128xf32>
    %27 = arith.cmpf oge, %25, %26 : vector<8x128xf32>
    %cst_20 = arith.constant 2.000000e-01 : f32
    %28 = vector.broadcast %cst_20 : f32 to vector<8x128xf32>
    %29 = arith.mulf %28, %25 : vector<8x128xf32>
    %30 = arith.select %27, %25, %29 : vector<8x128xi1>, vector<8x128xf32>
    %c0_21 = arith.constant 0 : index
    %c0_22 = arith.constant 0 : index
    %31 = vector.load %arg7[%c0_21, %c0_22] : memref<128x128xf32, #tpu.memory_space<vmem>>, vector<128x128xf32>
    %c0_23 = arith.constant 0 : index
    %c0_24 = arith.constant 0 : index
    %32 = vector.load %arg8[%c0_23, %c0_24] : memref<1x128xf32, #tpu.memory_space<vmem>>, vector<1x128xf32>
    %cst_25 = arith.constant dense<0.000000e+00> : vector<8x128xf32>
    %33 = tpu.matmul %30, %31, %cst_25 {dimension_numbers = #tpu.dot_dimension_numbers<[1], [0], [0], [1], [0, 0, 1, 1], [], []>} : vector<8x128xf32>, vector<128x128xf32>, vector<8x128xf32> -> vector<8x128xf32>
    %34 = vector.broadcast %32 : vector<1x128xf32> to vector<8x128xf32>
    %35 = arith.addf %33, %34 : vector<8x128xf32>
    %c0_26 = arith.constant 0 : index
    %c0_27 = arith.constant 0 : index
    %36 = vector.load %arg9[%c0_26, %c0_27] : memref<8x128xf32, #tpu.memory_space<vmem>>, vector<8x128xf32>
    tpu.vector_store %arg9[%c0_26, %c0_27], %35 {strides = array<i32>} : memref<8x128xf32, #tpu.memory_space<vmem>>, vector<8x128xf32>,
    return
  }
}

</mosaic_0001>

<llo_original>
// kernel: tpu_custom_call.1
$region0: #{tpu_custom_call.1}
  #allocation0 [shape = 'u32[]', space=smem, size = 0x4, offset = 0x4, fixed_abs, tag = 'smem constant byte address 0x4 - core index']
  #allocation1 [shape = 'u32[144,128]{1,0:T(1,128)}', space=vmem, size = 0x12000, scoped, tag = 'internal scratch']
  %s0 = inlined_call_operand.hbm [shape: f32[8,128], index: 0, kind: input, shape index: {}]
  %s1 = inlined_call_operand.hbm [shape: f32[128,128], index: 1, kind: input, shape index: {}]
  %s2 = inlined_call_operand.vmem [shape: f32[1,128], index: 2, kind: input, shape index: {}]
  %s3 = inlined_call_operand.hbm [shape: f32[128,128], index: 3, kind: input, shape index: {}]
  %s4 = inlined_call_operand.vmem [shape: f32[1,128], index: 4, kind: input, shape index: {}]
  %s5 = inlined_call_operand.hbm [shape: f32[128,128], index: 5, kind: input, shape index: {}]
  %s6 = inlined_call_operand.vmem [shape: f32[1,128], index: 6, kind: input, shape index: {}]
  %s7 = inlined_call_operand.hbm [shape: f32[128,128], index: 7, kind: input, shape index: {}]
  %s8 = inlined_call_operand.vmem [shape: f32[1,128], index: 8, kind: input, shape index: {}]
  %s9 = inlined_call_operand.hbm [shape: f32[8,128], index: 9, kind: output, shape index: {}]
  %s10 = sld [smem:[#allocation0]]
  $region66: #{tpu_custom_call.1} parent=0
    _
  %s12 = ssub.s32 1, %s10
  %s13 = scalar_select 0, %s12, %s10
  $region1: #{tpu_custom_call.1} parent=0
    #allocation2 [shape = 'u8[4096]{0}', space=vmem, size = 0x1000, scoped, tag = 'input window, operand 0, single buffered']
    #allocation3 [shape = 's32[1]{0}', space=sflag, size = 0x4, scoped, tag = 'scoped memory for tpu_custom_call.1']
    #allocation4 [shape = 's32[1]{0}', space=sflag, size = 0x4, scoped, tag = 'scoped memory for tpu_custom_call.1']
    #allocation5 [shape = 'u8[65536]{0}', space=vmem, size = 0x10000, scoped, tag = 'input window, operand 1, single buffered']
    #allocation6 [shape = 's32[1]{0}', space=sflag, size = 0x4, scoped, tag = 'scoped memory for tpu_custom_call.1']
    #allocation7 [shape = 'u8[65536]{0}', space=vmem, size = 0x10000, scoped, tag = 'input window, operand 3, single buffered']
    #allocation8 [shape = 'u8[65536]{0}', space=vmem, size = 0x10000, scoped, tag = 'input window, operand 5, single buffered']
    #allocation9 [shape = 's32[1]{0}', space=sflag, size = 0x4, scoped, tag = 'scoped memory for tpu_custom_call.1']
    #allocation10 [shape = 'u8[65536]{0}', space=vmem, size = 0x10000, scoped, tag = 'input window, operand 7, single buffered']
    #allocation11 [shape = 'u8[4096]{0}', space=vmem, size = 0x1000, scoped, tag = 'output window, operand 0, single buffered']
    %14 = vsyncpa [#allocation3], 0
    %15 = vsyncpa [#allocation6], 0
    %16 = vsyncpa [#allocation9], 0
    %17 = vsyncpa [#allocation4], 0
    // Predicated region
    $region2: #{tpu_custom_call.1} parent=1 // pred_check
      _
    $region3: #{tpu_custom_call.1} parent=1 // pred_check_branch
      %19 = sbr.rel (0) target = $region5
    $region4: #{tpu_custom_call.1} parent=1 // pred_region
      %s21 = ssub.s32 128, 128
      %22 = vsyncadd [#allocation3], %s21
      %s24 = sshll.u32 [#allocation2], 4
      %s25 = int_to_ptr.vmem [resolvable:$true] %s24
      %27 = dma.hbm_to_vmem [thread:$0]  %s0, 128, %s25, [#allocation3]
    $region5: #{tpu_custom_call.1} parent=1 // pred_fallthru
      _
    // Predicated region
    $region6: #{tpu_custom_call.1} parent=1 // pred_check
      _
    $region7: #{tpu_custom_call.1} parent=1 // pred_check_branch
      %29 = sbr.rel (0) target = $region9
    $region8: #{tpu_custom_call.1} parent=1 // pred_region
      %s31 = ssub.s32 2048, 2048
      %32 = vsyncadd [#allocation6], %s31
      %s33 = sshll.u32 [#allocation5], 4
      %s34 = int_to_ptr.vmem [resolvable:$true] %s33
      %39 = dma.hbm_to_vmem [thread:$0]  %s1, 2048, %s34, [#allocation6], 128, 128, 8
    $region9: #{tpu_custom_call.1} parent=1 // pred_fallthru
      _
    // Predicated region
    $region10: #{tpu_custom_call.1} parent=1 // pred_check
      _
    $region11: #{tpu_custom_call.1} parent=1 // pred_check_branch
      %41 = sbr.rel (0) target = $region13
    $region12: #{tpu_custom_call.1} parent=1 // pred_region
      _
    $region13: #{tpu_custom_call.1} parent=1 // pred_fallthru
      _
    // Predicated region
    $region14: #{tpu_custom_call.1} parent=1 // pred_check
      _
    $region15: #{tpu_custom_call.1} parent=1 // pred_check_branch
      %43 = sbr.rel (0) target = $region17
    $region16: #{tpu_custom_call.1} parent=1 // pred_region
      %s45 = ssub.s32 2048, 2048
      %46 = vsyncadd [#allocation6], %s45
      %s47 = sshll.u32 [#allocation7], 4
      %s48 = int_to_ptr.vmem [resolvable:$true] %s47
      %53 = dma.hbm_to_vmem [thread:$0]  %s3, 2048, %s48, [#allocation6], 128, 128, 8
    $region17: #{tpu_custom_call.1} parent=1 // pred_fallthru
      _
    // Predicated region
    $region18: #{tpu_custom_call.1} parent=1 // pred_check
      _
    $region19: #{tpu_custom_call.1} parent=1 // pred_check_branch
      %55 = sbr.rel (0) target = $region21
    $region20: #{tpu_custom_call.1} parent=1 // pred_region
      _
    $region21: #{tpu_custom_call.1} parent=1 // pred_fallthru
      _
    // Predicated region
    $region22: #{tpu_custom_call.1} parent=1 // pred_check
      _
    $region23: #{tpu_custom_call.1} parent=1 // pred_check_branch
      %57 = sbr.rel (0) target = $region25
    $region24: #{tpu_custom_call.1} parent=1 // pred_region
      %s59 = ssub.s32 2048, 2048
      %60 = vsyncadd [#allocation9], %s59
      %s61 = sshll.u32 [#allocation8], 4
      %s62 = int_to_ptr.vmem [resolvable:$true] %s61
      %67 = dma.hbm_to_vmem [thread:$0]  %s5, 2048, %s62, [#allocation9], 128, 128, 8
    $region25: #{tpu_custom_call.1} parent=1 // pred_fallthru
      _
    // Predicated region
    $region26: #{tpu_custom_call.1} parent=1 // pred_check
      _
    $region27: #{tpu_custom_call.1} parent=1 // pred_check_branch
      %69 = sbr.rel (0) target = $region29
    $region28: #{tpu_custom_call.1} parent=1 // pred_region
      _
    $region29: #{tpu_custom_call.1} parent=1 // pred_fallthru
      _
    // Predicated region
    $region30: #{tpu_custom_call.1} parent=1 // pred_check
      _
    $region31: #{tpu_custom_call.1} parent=1 // pred_check_branch
      %71 = sbr.rel (0) target = $region33
    $region32: #{tpu_custom_call.1} parent=1 // pred_region
      %s73 = ssub.s32 2048, 2048
      %74 = vsyncadd [#allocation9], %s73
      %s75 = sshll.u32 [#allocation10], 4
      %s76 = int_to_ptr.vmem [resolvable:$true] %s75
      %81 = dma.hbm_to_vmem [thread:$0]  %s7, 2048, %s76, [#allocation9], 128, 128, 8
    $region33: #{tpu_custom_call.1} parent=1 // pred_fallthru
      _
    // Predicated region
    $region34: #{tpu_custom_call.1} parent=1 // pred_check
      _
    $region35: #{tpu_custom_call.1} parent=1 // pred_check_branch
      %83 = sbr.rel (0) target = $region37
    $region36: #{tpu_custom_call.1} parent=1 // pred_region
      _
    $region37: #{tpu_custom_call.1} parent=1 // pred_fallthru
      _
    // Predicated region
    $region38: #{tpu_custom_call.1} parent=1 // pred_check
      _
    $region39: #{tpu_custom_call.1} parent=1 // pred_check_branch
      %85 = sbr.rel (0) target = $region41
    $region40: #{tpu_custom_call.1} parent=1 // pred_region
      %86 = dma.done [#allocation3], 128
    $region41: #{tpu_custom_call.1} parent=1 // pred_fallthru
      _
    // Predicated region
    $region42: #{tpu_custom_call.1} parent=1 // pred_check
      _
    $region43: #{tpu_custom_call.1} parent=1 // pred_check_branch
      %88 = sbr.rel (0) target = $region45
    $region44: #{tpu_custom_call.1} parent=1 // pred_region
      %89 = dma.done [#allocation6], 2048
    $region45: #{tpu_custom_call.1} parent=1 // pred_fallthru
      _
    // Predicated region
    $region46: #{tpu_custom_call.1} parent=1 // pred_check
      _
    $region47: #{tpu_custom_call.1} parent=1 // pred_check_branch
      %91 = sbr.rel (0) target = $region49
    $region48: #{tpu_custom_call.1} parent=1 // pred_region
      %92 = dma.done [#allocation6], 2048
    $region49: #{tpu_custom_call.1} parent=1 // pred_fallthru
      _
    // Predicated region
    $region50: #{tpu_custom_call.1} parent=1 // pred_check
      _
    $region51: #{tpu_custom_call.1} parent=1 // pred_check_branch
      %94 = sbr.rel (0) target = $region53
    $region52: #{tpu_custom_call.1} parent=1 // pred_region
      %95 = dma.done [#allocation9], 2048
    $region53: #{tpu_custom_call.1} parent=1 // pred_fallthru
      _
    // Predicated region
    $region54: #{tpu_custom_call.1} parent=1 // pred_check
      _
    $region55: #{tpu_custom_call.1} parent=1 // pred_check_branch
      %97 = sbr.rel (0) target = $region57
    $region56: #{tpu_custom_call.1} parent=1 // pred_region
      %98 = dma.done [#allocation9], 2048
    $region57: #{tpu_custom_call.1} parent=1 // pred_fallthru
      _
    %v99 = vld [vmem:[#allocation2] sm:$0xff]
    %v100 = vld [vmem:[#allocation5] sm:$0xff]
    %v101 = vld [vmem:[#allocation5 + $0x8] sm:$0xff]
    %v102 = vld [vmem:[#allocation5 + $0x10] sm:$0xff]
    %v103 = vld [vmem:[#allocation5 + $0x18] sm:$0xff]
    %v104 = vld [vmem:[#allocation5 + $0x20] sm:$0xff]
    %v105 = vld [vmem:[#allocation5 + $0x28] sm:$0xff]
    %v106 = vld [vmem:[#allocation5 + $0x30] sm:$0xff]
    %v107 = vld [vmem:[#allocation5 + $0x38] sm:$0xff]
    %v108 = vld [vmem:[#allocation5 + $0x40] sm:$0xff]
    %v109 = vld [vmem:[#allocation5 + $0x48] sm:$0xff]
    %v110 = vld [vmem:[#allocation5 + $0x50] sm:$0xff]
    %v111 = vld [vmem:[#allocation5 + $0x58] sm:$0xff]
    %v112 = vld [vmem:[#allocation5 + $0x60] sm:$0xff]
    %v113 = vld [vmem:[#allocation5 + $0x68] sm:$0xff]
    %v114 = vld [vmem:[#allocation5 + $0x70] sm:$0xff]
    %v115 = vld [vmem:[#allocation5 + $0x78] sm:$0xff]
    %v116 = vld [vmem:[%s2] sm:$0x1]
    %v118 = vlaneseq
    %v119 = vshrl.u32 %v118, 7
    %v120 = vsub.s32 0, %v119
    %v121 = vrot.slane %v116, %v120
    %123 = vmatprep.subr.mxu0 0.0
    %124 = vmatpush1.msra.mxu0 %v100
    %125 = vmatprep.subr.mxu0 0.0
    %126 = vmatpush1.msra.mxu0 %v101
    %127 = vmatprep.subr.mxu0 0.0
    %128 = vmatpush1.msra.mxu0 %v102
    %129 = vmatprep.subr.mxu0 0.0
    %130 = vmatpush1.msra.mxu0 %v103
    %131 = vmatprep.subr.mxu0 0.0
    %132 = vmatpush1.msra.mxu0 %v104
    %133 = vmatprep.subr.mxu0 0.0
    %134 = vmatpush1.msra.mxu0 %v105
    %135 = vmatprep.subr.mxu0 0.0
    %136 = vmatpush1.msra.mxu0 %v106
    %137 = vmatprep.subr.mxu0 0.0
    %138 = vmatpush1.msra.mxu0 %v107
    %139 = vmatprep.subr.mxu0 0.0
    %140 = vmatpush1.msra.mxu0 %v108
    %141 = vmatprep.subr.mxu0 0.0
    %142 = vmatpush1.msra.mxu0 %v109
    %143 = vmatprep.subr.mxu0 0.0
    %144 = vmatpush1.msra.mxu0 %v110
    %145 = vmatprep.subr.mxu0 0.0
    %146 = vmatpush1.msra.mxu0 %v111
    %147 = vmatprep.subr.mxu0 0.0
    %148 = vmatpush1.msra.mxu0 %v112
    %149 = vmatprep.subr.mxu0 0.0
    %150 = vmatpush1.msra.mxu0 %v113
    %151 = vmatprep.subr.mxu0 0.0
    %152 = vmatpush1.msra.mxu0 %v114
    %153 = vmatprep.subr.mxu0 0.0
    %154 = vmatpush1.msra.mxu0 %v115
    %155 = vmatprep.subr.mxu0 0.0
    %156 = vmatpush1.msra.mxu0 0.0
    %157 = vmatprep.subr.mxu0 0.0
    %158 = vmatpush1.msra.mxu0 0.0
    %159 = vmatprep.subr.mxu0 0.0
    %160 = vmatpush1.msra.mxu0 0.0
    %161 = vmatprep.subr.mxu0 0.0
    %162 = vmatpush1.msra.mxu0 0.0
    %163 = vmatprep.subr.mxu0 0.0
    %164 = vmatpush1.msra.mxu0 0.0
    %165 = vmatprep.subr.mxu0 0.0
    %166 = vmatpush1.msra.mxu0 0.0
    %167 = vmatprep.subr.mxu0 0.0
    %168 = vmatpush1.msra.mxu0 0.0
    %169 = vmatprep.subr.mxu0 0.0
    %170 = vmatpush1.msra.mxu0 0.0
    %171 = vmatprep.subr.mxu0 0.0
    %172 = vmatpush1.msra.mxu0 0.0
    %173 = vmatprep.subr.mxu0 0.0
    %174 = vmatpush1.msra.mxu0 0.0
    %175 = vmatprep.subr.mxu0 0.0
    %176 = vmatpush1.msra.mxu0 0.0
    %177 = vmatprep.subr.mxu0 0.0
    %178 = vmatpush1.msra.mxu0 0.0
    %179 = vmatprep.subr.mxu0 0.0
    %180 = vmatpush1.msra.mxu0 0.0
    %181 = vmatprep.subr.mxu0 0.0
    %182 = vmatpush1.msra.mxu0 0.0
    %183 = vmatprep.subr.mxu0 0.0
    %184 = vmatpush1.msra.mxu0 0.0
    %185 = vmatprep.subr.mxu0 0.0
    %186 = vmatpush1.msra.mxu0 0.0
    %187 = vmatprep.mubr.f32.mxu0 0.0
    %188 = vmatmul.mubr.f32.gmra.mrb[0].mxu0 %v99
    %v189 = vpop.f32.mrb[0].mxu0
    %v190 = vadd.f32 %v121, %v189
    %v191 = vpop.f32.mrb[0].mxu0
    %192 = vdwg.mxu0
    %vm193 = vcmp.ge.f32.partialorder %v190, 0.0
    %v194 = vmul.f32 %v190, 0.2
    %v195 = vsel %vm193, %v190, %v194
    %v196 = vld [vmem:[#allocation7] sm:$0xff]
    %v197 = vld [vmem:[#allocation7 + $0x8] sm:$0xff]
    %v198 = vld [vmem:[#allocation7 + $0x10] sm:$0xff]
    %v199 = vld [vmem:[#allocation7 + $0x18] sm:$0xff]
    %v200 = vld [vmem:[#allocation7 + $0x20] sm:$0xff]
    %v201 = vld [vmem:[#allocation7 + $0x28] sm:$0xff]
    %v202 = vld [vmem:[#allocation7 + $0x30] sm:$0xff]
    %v203 = vld [vmem:[#allocation7 + $0x38] sm:$0xff]
    %v204 = vld [vmem:[#allocation7 + $0x40] sm:$0xff]
    %v205 = vld [vmem:[#allocation7 + $0x48] sm:$0xff]
    %v206 = vld [vmem:[#allocation7 + $0x50] sm:$0xff]
    %v207 = vld [vmem:[#allocation7 + $0x58] sm:$0xff]
    %v208 = vld [vmem:[#allocation7 + $0x60] sm:$0xff]
    %v209 = vld [vmem:[#allocation7 + $0x68] sm:$0xff]
    %v210 = vld [vmem:[#allocation7 + $0x70] sm:$0xff]
    %v211 = vld [vmem:[#allocation7 + $0x78] sm:$0xff]
    %v212 = vld [vmem:[%s4] sm:$0x1]
    %v214 = vlaneseq
    %v215 = vshrl.u32 %v214, 7
    %v216 = vsub.s32 0, %v215
    %v217 = vrot.slane %v212, %v216
    %219 = vmatprep.subr.mxu0 0.0
    %220 = vmatpush1.msra.mxu0 %v196
    %221 = vmatprep.subr.mxu0 0.0
    %222 = vmatpush1.msra.mxu0 %v197
    %223 = vmatprep.subr.mxu0 0.0
    %224 = vmatpush1.msra.mxu0 %v198
    %225 = vmatprep.subr.mxu0 0.0
    %226 = vmatpush1.msra.mxu0 %v199
    %227 = vmatprep.subr.mxu0 0.0
    %228 = vmatpush1.msra.mxu0 %v200
    %229 = vmatprep.subr.mxu0 0.0
    %230 = vmatpush1.msra.mxu0 %v201
    %231 = vmatprep.subr.mxu0 0.0
    %232 = vmatpush1.msra.mxu0 %v202
    %233 = vmatprep.subr.mxu0 0.0
    %234 = vmatpush1.msra.mxu0 %v203
    %235 = vmatprep.subr.mxu0 0.0
    %236 = vmatpush1.msra.mxu0 %v204
    %237 = vmatprep.subr.mxu0 0.0
    %238 = vmatpush1.msra.mxu0 %v205
    %239 = vmatprep.subr.mxu0 0.0
    %240 = vmatpush1.msra.mxu0 %v206
    %241 = vmatprep.subr.mxu0 0.0
    %242 = vmatpush1.msra.mxu0 %v207
    %243 = vmatprep.subr.mxu0 0.0
    %244 = vmatpush1.msra.mxu0 %v208
    %245 = vmatprep.subr.mxu0 0.0
    %246 = vmatpush1.msra.mxu0 %v209
    %247 = vmatprep.subr.mxu0 0.0
    %248 = vmatpush1.msra.mxu0 %v210
    %249 = vmatprep.subr.mxu0 0.0
    %250 = vmatpush1.msra.mxu0 %v211
    %251 = vmatprep.subr.mxu0 0.0
    %252 = vmatpush1.msra.mxu0 0.0
    %253 = vmatprep.subr.mxu0 0.0
    %254 = vmatpush1.msra.mxu0 0.0
    %255 = vmatprep.subr.mxu0 0.0
    %256 = vmatpush1.msra.mxu0 0.0
    %257 = vmatprep.subr.mxu0 0.0
    %258 = vmatpush1.msra.mxu0 0.0
    %259 = vmatprep.subr.mxu0 0.0
    %260 = vmatpush1.msra.mxu0 0.0
    %261 = vmatprep.subr.mxu0 0.0
    %262 = vmatpush1.msra.mxu0 0.0
    %263 = vmatprep.subr.mxu0 0.0
    %264 = vmatpush1.msra.mxu0 0.0
    %265 = vmatprep.subr.mxu0 0.0
    %266 = vmatpush1.msra.mxu0 0.0
    %267 = vmatprep.subr.mxu0 0.0
    %268 = vmatpush1.msra.mxu0 0.0
    %269 = vmatprep.subr.mxu0 0.0
    %270 = vmatpush1.msra.mxu0 0.0
    %271 = vmatprep.subr.mxu0 0.0
    %272 = vmatpush1.msra.mxu0 0.0
    %273 = vmatprep.subr.mxu0 0.0
    %274 = vmatpush1.msra.mxu0 0.0
    %275 = vmatprep.subr.mxu0 0.0
    %276 = vmatpush1.msra.mxu0 0.0
    %277 = vmatprep.subr.mxu0 0.0
    %278 = vmatpush1.msra.mxu0 0.0
    %279 = vmatprep.subr.mxu0 0.0
    %280 = vmatpush1.msra.mxu0 0.0
    %281 = vmatprep.subr.mxu0 0.0
    %282 = vmatpush1.msra.mxu0 0.0
    %283 = vmatprep.mubr.f32.mxu0 0.0
    %284 = vmatmul.mubr.f32.gmra.mrb[0].mxu0 %v195
    %v285 = vpop.f32.mrb[0].mxu0
    %v286 = vadd.f32 %v217, %v285
    %v287 = vpop.f32.mrb[0].mxu0
    %288 = vdwg.mxu0
    %vm289 = vcmp.ge.f32.partialorder %v286, 0.0
    %v290 = vmul.f32 %v286, 0.2
    %v291 = vsel %vm289, %v286, %v290
    %v292 = vld [vmem:[#allocation8] sm:$0xff]
    %v293 = vld [vmem:[#allocation8 + $0x8] sm:$0xff]
    %v294 = vld [vmem:[#allocation8 + $0x10] sm:$0xff]
    %v295 = vld [vmem:[#allocation8 + $0x18] sm:$0xff]
    %v296 = vld [vmem:[#allocation8 + $0x20] sm:$0xff]
    %v297 = vld [vmem:[#allocation8 + $0x28] sm:$0xff]
    %v298 = vld [vmem:[#allocation8 + $0x30] sm:$0xff]
    %v299 = vld [vmem:[#allocation8 + $0x38] sm:$0xff]
    %v300 = vld [vmem:[#allocation8 + $0x40] sm:$0xff]
    %v301 = vld [vmem:[#allocation8 + $0x48] sm:$0xff]
    %v302 = vld [vmem:[#allocation8 + $0x50] sm:$0xff]
    %v303 = vld [vmem:[#allocation8 + $0x58] sm:$0xff]
    %v304 = vld [vmem:[#allocation8 + $0x60] sm:$0xff]
    %v305 = vld [vmem:[#allocation8 + $0x68] sm:$0xff]
    %v306 = vld [vmem:[#allocation8 + $0x70] sm:$0xff]
    %v307 = vld [vmem:[#allocation8 + $0x78] sm:$0xff]
    %v308 = vld [vmem:[%s6] sm:$0x1]
    %v310 = vlaneseq
    %v311 = vshrl.u32 %v310, 7
    %v312 = vsub.s32 0, %v311
    %v313 = vrot.slane %v308, %v312
    %315 = vmatprep.subr.mxu0 0.0
    %316 = vmatpush1.msra.mxu0 %v292
    %317 = vmatprep.subr.mxu0 0.0
    %318 = vmatpush1.msra.mxu0 %v293
    %319 = vmatprep.subr.mxu0 0.0
    %320 = vmatpush1.msra.mxu0 %v294
    %321 = vmatprep.subr.mxu0 0.0
    %322 = vmatpush1.msra.mxu0 %v295
    %323 = vmatprep.subr.mxu0 0.0
    %324 = vmatpush1.msra.mxu0 %v296
    %325 = vmatprep.subr.mxu0 0.0
    %326 = vmatpush1.msra.mxu0 %v297
    %327 = vmatprep.subr.mxu0 0.0
    %328 = vmatpush1.msra.mxu0 %v298
    %329 = vmatprep.subr.mxu0 0.0
    %330 = vmatpush1.msra.mxu0 %v299
    %331 = vmatprep.subr.mxu0 0.0
    %332 = vmatpush1.msra.mxu0 %v300
    %333 = vmatprep.subr.mxu0 0.0
    %334 = vmatpush1.msra.mxu0 %v301
    %335 = vmatprep.subr.mxu0 0.0
    %336 = vmatpush1.msra.mxu0 %v302
    %337 = vmatprep.subr.mxu0 0.0
    %338 = vmatpush1.msra.mxu0 %v303
    %339 = vmatprep.subr.mxu0 0.0
    %340 = vmatpush1.msra.mxu0 %v304
    %341 = vmatprep.subr.mxu0 0.0
    %342 = vmatpush1.msra.mxu0 %v305
    %343 = vmatprep.subr.mxu0 0.0
    %344 = vmatpush1.msra.mxu0 %v306
    %345 = vmatprep.subr.mxu0 0.0
    %346 = vmatpush1.msra.mxu0 %v307
    %347 = vmatprep.subr.mxu0 0.0
    %348 = vmatpush1.msra.mxu0 0.0
    %349 = vmatprep.subr.mxu0 0.0
    %350 = vmatpush1.msra.mxu0 0.0
    %351 = vmatprep.subr.mxu0 0.0
    %352 = vmatpush1.msra.mxu0 0.0
    %353 = vmatprep.subr.mxu0 0.0
    %354 = vmatpush1.msra.mxu0 0.0
    %355 = vmatprep.subr.mxu0 0.0
    %356 = vmatpush1.msra.mxu0 0.0
    %357 = vmatprep.subr.mxu0 0.0
    %358 = vmatpush1.msra.mxu0 0.0
    %359 = vmatprep.subr.mxu0 0.0
    %360 = vmatpush1.msra.mxu0 0.0
    %361 = vmatprep.subr.mxu0 0.0
    %362 = vmatpush1.msra.mxu0 0.0
    %363 = vmatprep.subr.mxu0 0.0
    %364 = vmatpush1.msra.mxu0 0.0
    %365 = vmatprep.subr.mxu0 0.0
    %366 = vmatpush1.msra.mxu0 0.0
    %367 = vmatprep.subr.mxu0 0.0
    %368 = vmatpush1.msra.mxu0 0.0
    %369 = vmatprep.subr.mxu0 0.0
    %370 = vmatpush1.msra.mxu0 0.0
    %371 = vmatprep.subr.mxu0 0.0
    %372 = vmatpush1.msra.mxu0 0.0
    %373 = vmatprep.subr.mxu0 0.0
    %374 = vmatpush1.msra.mxu0 0.0
    %375 = vmatprep.subr.mxu0 0.0
    %376 = vmatpush1.msra.mxu0 0.0
    %377 = vmatprep.subr.mxu0 0.0
    %378 = vmatpush1.msra.mxu0 0.0
    %379 = vmatprep.mubr.f32.mxu0 0.0
    %380 = vmatmul.mubr.f32.gmra.mrb[0].mxu0 %v291
    %v381 = vpop.f32.mrb[0].mxu0
    %v382 = vadd.f32 %v313, %v381
    %v383 = vpop.f32.mrb[0].mxu0
    %384 = vdwg.mxu0
    %vm385 = vcmp.ge.f32.partialorder %v382, 0.0
    %v386 = vmul.f32 %v382, 0.2
    %v387 = vsel %vm385, %v382, %v386
    %v388 = vld [vmem:[#allocation10] sm:$0xff]
    %v389 = vld [vmem:[#allocation10 + $0x8] sm:$0xff]
    %v390 = vld [vmem:[#allocation10 + $0x10] sm:$0xff]
    %v391 = vld [vmem:[#allocation10 + $0x18] sm:$0xff]
    %v392 = vld [vmem:[#allocation10 + $0x20] sm:$0xff]
    %v393 = vld [vmem:[#allocation10 + $0x28] sm:$0xff]
    %v394 = vld [vmem:[#allocation10 + $0x30] sm:$0xff]
    %v395 = vld [vmem:[#allocation10 + $0x38] sm:$0xff]
    %v396 = vld [vmem:[#allocation10 + $0x40] sm:$0xff]
    %v397 = vld [vmem:[#allocation10 + $0x48] sm:$0xff]
    %v398 = vld [vmem:[#allocation10 + $0x50] sm:$0xff]
    %v399 = vld [vmem:[#allocation10 + $0x58] sm:$0xff]
    %v400 = vld [vmem:[#allocation10 + $0x60] sm:$0xff]
    %v401 = vld [vmem:[#allocation10 + $0x68] sm:$0xff]
    %v402 = vld [vmem:[#allocation10 + $0x70] sm:$0xff]
    %v403 = vld [vmem:[#allocation10 + $0x78] sm:$0xff]
    %v404 = vld [vmem:[%s8] sm:$0x1]
    %v406 = vlaneseq
    %v407 = vshrl.u32 %v406, 7
    %v408 = vsub.s32 0, %v407
    %v409 = vrot.slane %v404, %v408
    %411 = vmatprep.subr.mxu0 0.0
    %412 = vmatpush1.msra.mxu0 %v388
    %413 = vmatprep.subr.mxu0 0.0
    %414 = vmatpush1.msra.mxu0 %v389
    %415 = vmatprep.subr.mxu0 0.0
    %416 = vmatpush1.msra.mxu0 %v390
    %417 = vmatprep.subr.mxu0 0.0
    %418 = vmatpush1.msra.mxu0 %v391
    %419 = vmatprep.subr.mxu0 0.0
    %420 = vmatpush1.msra.mxu0 %v392
    %421 = vmatprep.subr.mxu0 0.0
    %422 = vmatpush1.msra.mxu0 %v393
    %423 = vmatprep.subr.mxu0 0.0
    %424 = vmatpush1.msra.mxu0 %v394
    %425 = vmatprep.subr.mxu0 0.0
    %426 = vmatpush1.msra.mxu0 %v395
    %427 = vmatprep.subr.mxu0 0.0
    %428 = vmatpush1.msra.mxu0 %v396
    %429 = vmatprep.subr.mxu0 0.0
    %430 = vmatpush1.msra.mxu0 %v397
    %431 = vmatprep.subr.mxu0 0.0
    %432 = vmatpush1.msra.mxu0 %v398
    %433 = vmatprep.subr.mxu0 0.0
    %434 = vmatpush1.msra.mxu0 %v399
    %435 = vmatprep.subr.mxu0 0.0
    %436 = vmatpush1.msra.mxu0 %v400
    %437 = vmatprep.subr.mxu0 0.0
    %438 = vmatpush1.msra.mxu0 %v401
    %439 = vmatprep.subr.mxu0 0.0
    %440 = vmatpush1.msra.mxu0 %v402
    %441 = vmatprep.subr.mxu0 0.0
    %442 = vmatpush1.msra.mxu0 %v403
    %443 = vmatprep.subr.mxu0 0.0
    %444 = vmatpush1.msra.mxu0 0.0
    %445 = vmatprep.subr.mxu0 0.0
    %446 = vmatpush1.msra.mxu0 0.0
    %447 = vmatprep.subr.mxu0 0.0
    %448 = vmatpush1.msra.mxu0 0.0
    %449 = vmatprep.subr.mxu0 0.0
    %450 = vmatpush1.msra.mxu0 0.0
    %451 = vmatprep.subr.mxu0 0.0
    %452 = vmatpush1.msra.mxu0 0.0
    %453 = vmatprep.subr.mxu0 0.0
    %454 = vmatpush1.msra.mxu0 0.0
    %455 = vmatprep.subr.mxu0 0.0
    %456 = vmatpush1.msra.mxu0 0.0
    %457 = vmatprep.subr.mxu0 0.0
    %458 = vmatpush1.msra.mxu0 0.0
    %459 = vmatprep.subr.mxu0 0.0
    %460 = vmatpush1.msra.mxu0 0.0
    %461 = vmatprep.subr.mxu0 0.0
    %462 = vmatpush1.msra.mxu0 0.0
    %463 = vmatprep.subr.mxu0 0.0
    %464 = vmatpush1.msra.mxu0 0.0
    %465 = vmatprep.subr.mxu0 0.0
    %466 = vmatpush1.msra.mxu0 0.0
    %467 = vmatprep.subr.mxu0 0.0
    %468 = vmatpush1.msra.mxu0 0.0
    %469 = vmatprep.subr.mxu0 0.0
    %470 = vmatpush1.msra.mxu0 0.0
    %471 = vmatprep.subr.mxu0 0.0
    %472 = vmatpush1.msra.mxu0 0.0
    %473 = vmatprep.subr.mxu0 0.0
    %474 = vmatpush1.msra.mxu0 0.0
    %475 = vmatprep.mubr.f32.mxu0 0.0
    %476 = vmatmul.mubr.f32.gmra.mrb[0].mxu0 %v387
    %v477 = vpop.f32.mrb[0].mxu0
    %v478 = vadd.f32 %v409, %v477
    %v479 = vpop.f32.mrb[0].mxu0
    %480 = vdwg.mxu0
    %481 = vst [vmem:[#allocation11] sm:$0xff] %v478
    // Predicated region
    $region58: #{tpu_custom_call.1} parent=1 // pred_check
      _
    $region59: #{tpu_custom_call.1} parent=1 // pred_check_branch
      %483 = sbr.rel (0) target = $region61
    $region60: #{tpu_custom_call.1} parent=1 // pred_region
      %s485 = ssub.s32 128, 128
      %486 = vsyncadd [#allocation4], %s485
      %s488 = sshll.u32 [#allocation11], 4
      %s489 = int_to_ptr.vmem [resolvable:$true] %s488
      %491 = dma.vmem_to_hbm [thread:$0]  %s489, 128, %s9, [#allocation4]
    $region61: #{tpu_custom_call.1} parent=1 // pred_fallthru
      _
    // Predicated region
    $region62: #{tpu_custom_call.1} parent=1 // pred_check
      _
    $region63: #{tpu_custom_call.1} parent=1 // pred_check_branch
      %493 = sbr.rel (0) target = $region65
    $region64: #{tpu_custom_call.1} parent=1 // pred_region
      %494 = dma.done [#allocation4], 128
    $region65: #{tpu_custom_call.1} parent=1 // pred_fallthru
      _
    %495 = vsyncpa [#allocation3], 1
    %496 = vsyncpa [#allocation6], 1
    %497 = vsyncpa [#allocation9], 1
    %498 = vsyncpa [#allocation4], 1

</llo_original>
